<compile_context>
chip_gen: v7x
topology: tpu7x:2x2x1
jax: 0.10.0
libtpu: 0.0.40
codegen_flags: <defaults>
</compile_context>

<pallas_src>
import functools

import jax
import jax.numpy as jnp
from jax.experimental import pallas as pl
from jax.experimental.pallas import tpu as pltpu


def _cdiv(a, b):
    return -(-a // b)


def _round_up(a, b):
    return _cdiv(a, b) * b


def _make_kernel(momentum_params, s_blk, lanes):
    """s_blk: sublane rows per grid block; lanes: last-dim width of every block."""
    alphas = tuple(float(a) for a in momentum_params)
    N = len(alphas)
    R = 2 * N + 1
    chunk = s_blk if s_blk <= 8 else 8          # s_blk is a multiple of 8 whenever > 8
    n_chunks = max(1, s_blk // chunk)

    def kernel(flag_ref, vec_ref, tail_ref, learn_ref, out_ref, new_tail_ref):
        # flag_ref: SMEM scalar-prefetch (1,) int32 -- 1 iff the state is already initialized.
        initialized = flag_ref[0] != 0

        def process(sl):
            v = vec_ref[0, sl, :].astype(jnp.float32)            # (chunk, lanes)

            def lrow(r):
                return learn_ref[r, sl, :].astype(jnp.float32)

            # Row-wise max for a numerically stable softmax over the R momentum rows.
            m = lrow(0)
            for r in range(1, R):
                m = jnp.maximum(m, lrow(r))

            @pl.when(initialized)
            def _update():
                # EMA-update branch.  Old head/center rows are never read (tail-only state):
                #   tail_j   = a_j*old_tail_j + (1-a_j)*v      (stored)
                #   center   = 0.5*v                           (recomputed)
                #   head_i   = v - tail_{N-1-i}                (recomputed, torch.flip)
                denom = jnp.exp(lrow(N) - m)                     # center softmax weight
                acc = denom * (0.5 * v)
                for j in range(N):
                    a = alphas[j]
                    t = a * tail_ref[j, sl, :].astype(jnp.float32) + (1.0 - a) * v
                    new_tail_ref[j, sl, :] = t.astype(new_tail_ref.dtype)
                    e_t = jnp.exp(lrow(N + 1 + j) - m)           # weight of tail row j
                    e_h = jnp.exp(lrow(N - 1 - j) - m)           # weight of head row N-1-j
                    denom = denom + e_t + e_h
                    acc = acc + e_t * t + e_h * (v - t)
                out_ref[0, sl, :] = ((2.0 * acc) / denom).astype(out_ref.dtype)

            @pl.when(jnp.logical_not(initialized))
            def _init():
                # First call: full-matrix rows [0, N) stay zero, rows [N, 2N] <- v.
                w_used = jnp.exp(lrow(N) - m)
                for r in range(N + 1, R):
                    w_used = w_used + jnp.exp(lrow(r) - m)
                w_zero = jnp.exp(lrow(0) - m)
                for r in range(1, N):
                    w_zero = w_zero + jnp.exp(lrow(r) - m)
                vt = v.astype(new_tail_ref.dtype)
                for j in range(N):
                    new_tail_ref[j, sl, :] = vt
                out_ref[0, sl, :] = ((2.0 * w_used * v) / (w_used + w_zero)).astype(out_ref.dtype)

        if n_chunks == 1:
            process(slice(None))
        else:
            @pl.loop(0, n_chunks)
            def _(c):
                start = pl.multiple_of(c * chunk, chunk)
                process(pl.ds(start, chunk))

    return kernel


@functools.partial(jax.jit, static_argnames=("momentum_params", "block_sublanes"))
def momentum_forward(vector, momentum_tail, learnable_matrix, momentum_params,
                     initialized=None, block_sublanes=1024):
    """One forward step of the Momentum module.

    Args:
      vector:           (1, C, L) input.
      momentum_tail:    (N, C, L) carried state == rows [N+1, 2N] of the PyTorch
                        momentum_matrix (the only rows the update ever reads).
                        Start from zeros (== reset_momentum()).
      learnable_matrix: (R, C, L), R = 2N+1; row r == PyTorch learnable_matrix[:, r, :].
      momentum_params:  tuple of N alphas (static).
      initialized:      optional bool scalar -- False for the very first step, True after.
                        If None it is derived with a cheap N-row scan of the tail state;
                        prefer passing it explicitly (saves an extra HBM read per call).
    Returns:
      (output (1, C, L), new_momentum_tail (N, C, L)).
    """
    dtype = vector.dtype
    _, C, L = vector.shape
    N = len(momentum_params)
    R = 2 * N + 1
    assert momentum_tail.shape == (N, C, L), momentum_tail.shape
    assert learnable_matrix.shape == (R, C, L), learnable_matrix.shape
    CL = C * L

    # Layout: prefer the lane-dense (rows, C*L//128, 128) view (a free contiguous reshape)
    # so every vreg is fully populated; if C*L is not a multiple of 128, keep the natural
    # (rows, C, L) layout and tile over channels.  No host-side pad/unpad in either case.
    if CL % 128 == 0:
        S, Lb = CL // 128, 128
        vec3 = vector.reshape(1, S, Lb)
        tail3 = momentum_tail.reshape(N, S, Lb)
        learn3 = learnable_matrix.reshape(R, S, Lb)
    else:
        S, Lb = C, L
        vec3, tail3, learn3 = vector, momentum_tail, learnable_matrix

    # Tile size along the sublane axis: as big as a ~16 MiB double-buffered working set
    # allows (block_sublanes 8x128-rows by default), while keeping >= 2 grid steps so the
    # "parallel" axis can span both TensorCores on v7x.
    if S <= 8:
        Sb = S
    else:
        target = max(8, ((block_sublanes * 128) // _round_up(Lb, 128)) // 8 * 8)
        Sb = max(8, min(target, _round_up(_cdiv(S, 2), 8)))
    grid = (_cdiv(S, Sb),)

    if initialized is None:
        # Fallback "is the state initialized?" test -- scans only the N tail rows.
        flag = jnp.any(momentum_tail != 0)
    else:
        flag = jnp.asarray(initialized)
    flag = flag.astype(jnp.int32).reshape((1,))

    kernel = _make_kernel(momentum_params, Sb, Lb)

    out3, new_tail3 = pl.pallas_call(
        kernel,
        out_shape=(
            jax.ShapeDtypeStruct((1, S, Lb), dtype),
            jax.ShapeDtypeStruct((N, S, Lb), dtype),
        ),
        grid_spec=pltpu.PrefetchScalarGridSpec(
            num_scalar_prefetch=1,
            grid=grid,
            in_specs=[
                pl.BlockSpec((1, Sb, Lb), lambda i, flag: (0, i, 0)),   # vector
                pl.BlockSpec((N, Sb, Lb), lambda i, flag: (0, i, 0)),   # tail state (read)
                pl.BlockSpec((R, Sb, Lb), lambda i, flag: (0, i, 0)),   # learnable matrix
            ],
            out_specs=(
                pl.BlockSpec((1, Sb, Lb), lambda i, flag: (0, i, 0)),   # output vector
                pl.BlockSpec((N, Sb, Lb), lambda i, flag: (0, i, 0)),   # new tail state
            ),
        ),
        compiler_params=pltpu.CompilerParams(
            dimension_semantics=("parallel",),
            # ~16 MiB double-buffered working set at the default tile; v5e's 16 MiB default
            # scoped limit would be too tight, v7x's 64 MiB physical VMEM keeps headroom.
            vmem_limit_bytes=48 * 1024 * 1024,
        ),
        # No input_output_aliases: both outputs are fully written by the kernel, so
        # aliasing saves no traffic and a blocked donation would silently insert a copy.
    )(flag, vec3, tail3, learn3)

    return out3.reshape(1, C, L), new_tail3.reshape(N, C, L)


def expand_momentum_state(vector, new_tail, initialized):
    """Rebuild the full (R, C, L) momentum matrix of the PyTorch module from the
    tail-only state, given the vector of the step that produced it."""
    v = vector[0][None]
    if initialized:
        head = jnp.flip(v - new_tail, axis=0)
        center = 0.5 * v
    else:
        head = jnp.zeros_like(new_tail)
        center = v
    return jnp.concatenate([head, center, new_tail], axis=0)


def momentum_forward_ref(vector, mom_full, learn, momentum_params):
    """Pure-JAX reference matching the PyTorch forward (full (R, C, L) state)."""
    N = len(momentum_params)
    v = vector[0]
    if bool(jnp.all(mom_full == 0.0)):
        new_mom = mom_full.at[N:].set(jnp.broadcast_to(v[None], (N + 1,) + v.shape))
    else:
        alpha = jnp.asarray(momentum_params, mom_full.dtype)[:, None, None]
        new_tail = alpha * mom_full[N + 1:] + (1.0 - alpha) * v[None]
        head = jnp.flip(v[None] - new_tail, axis=0)
        new_mom = jnp.concatenate([head, 0.5 * v[None], new_tail], axis=0)
    sm = jax.nn.softmax(learn, axis=0)
    out = 2.0 * jnp.sum(sm * new_mom, axis=0)
    return out[None], new_mom


if __name__ == "__main__":
    mp = (0.9, 0.7, 0.5)          # cfg.momentum_params
    N = len(mp)
    R = 2 * N + 1

    def learnable_init(key, C, L):
        # PyTorch __init__ values plus a small perturbation so every row is distinct.
        base = jnp.stack(
            [jnp.full((C, L), -((N - idx) ** 2) / 4.0, dtype=jnp.float32) for idx in range(R)],
            axis=0)
        return base + 0.05 * jax.random.normal(key, (R, C, L), dtype=jnp.float32)

    def run_case(key, C, L, explicit_flag=True, **kw):
        kl, k1, k2 = jax.random.split(key, 3)
        v1 = jax.random.normal(k1, (1, C, L), dtype=jnp.float32)
        v2 = jax.random.normal(k2, (1, C, L), dtype=jnp.float32)
        learn = learnable_init(kl, C, L)
        tail0 = jnp.zeros((N, C, L), dtype=jnp.float32)        # == reset_momentum()
        mom_full0 = jnp.zeros((R, C, L), dtype=jnp.float32)

        if explicit_flag:
            out1, tail1 = momentum_forward(v1, tail0, learn, mp, initialized=False, **kw)
            out2, tail2 = momentum_forward(v2, tail1, learn, mp, initialized=True, **kw)
        else:
            out1, tail1 = momentum_forward(v1, tail0, learn, mp, **kw)
            out2, tail2 = momentum_forward(v2, tail1, learn, mp, **kw)
        jax.block_until_ready((out1, tail1, out2, tail2))

        r_out1, r_mom1 = momentum_forward_ref(v1, mom_full0, learn, mp)
        r_out2, r_mom2 = momentum_forward_ref(v2, r_mom1, learn, mp)

        assert out1.shape == (1, C, L) and tail1.shape == (N, C, L)
        assert jnp.allclose(out1, r_out1, atol=1e-5, rtol=1e-5), (C, L, "out step1")
        assert jnp.allclose(out2, r_out2, atol=1e-5, rtol=1e-5), (C, L, "out step2")
        assert jnp.allclose(tail1, r_mom1[N + 1:], atol=1e-6, rtol=1e-6), (C, L, "tail step1")
        assert jnp.allclose(tail2, r_mom2[N + 1:], atol=1e-6, rtol=1e-6), (C, L, "tail step2")
        # Full-state equivalence via the expansion helper.
        assert jnp.allclose(expand_momentum_state(v1, tail1, False), r_mom1,
                            atol=1e-6, rtol=1e-6), (C, L, "full state step1")
        assert jnp.allclose(expand_momentum_state(v2, tail2, True), r_mom2,
                            atol=1e-6, rtol=1e-6), (C, L, "full state step2")

    keys = jax.random.split(jax.random.PRNGKey(0), 4)
    # C*L multiple of 128 -> lane-dense path, single grid step.
    run_case(keys[0], C=4, L=32)
    # Lane-dense path with a real grid (S=12 rows -> 2 steps, partial last block) and the
    # auto-detected "initialized" fallback.
    run_case(keys[1], C=16, L=96, explicit_flag=False)
    # Ragged C*L (not a multiple of 128) -> natural (rows, C, L) layout, single block.
    run_case(keys[2], C=4, L=33)
    # Ragged C*L with channel tiling (C=12 -> blocks of 8 channels, partial last block).
    run_case(keys[3], C=12, L=50)

    print("KERNEL_OK")
</pallas_src>

<mosaic_0001>
module attributes {stable_mosaic.version = 11 : i64} {
  func.func @kernel(%arg0: i32, %arg1: memref<1xi32, #tpu.memory_space<smem>>, %arg2: memref<1x1x128xf32, #tpu.memory_space<vmem>>, %arg3: memref<3x1x128xf32, #tpu.memory_space<vmem>>, %arg4: memref<7x1x128xf32, #tpu.memory_space<vmem>>, %arg5: memref<1x1x128xf32, #tpu.memory_space<vmem>>, %arg6: memref<3x1x128xf32, #tpu.memory_space<vmem>>) attributes {dimension_semantics = [#tpu.dimension_semantics<parallel>], iteration_bounds = array<i64: 1>, scalar_prefetch = 1 : i64, scratch_operands = 0 : i64, tpu.core_type = #tpu.core_type<tc>, window_params = [{transform_indices = @transform_0, window_bounds = array<i64: 1, 1, 128>}, {transform_indices = @transform_1, window_bounds = array<i64: 3, 1, 128>}, {transform_indices = @transform_2, window_bounds = array<i64: 7, 1, 128>}, {transform_indices = @transform_3, window_bounds = array<i64: 1, 1, 128>}, {transform_indices = @transform_4, window_bounds = array<i64: 3, 1, 128>}]} {
    %c0 = arith.constant 0 : index
    %0 = memref.load %arg1[%c0] : memref<1xi32, #tpu.memory_space<smem>>
    %c0_i32 = arith.constant 0 : i32
    %1 = arith.cmpi ne, %0, %c0_i32 : i32
    %c0_0 = arith.constant 0 : index
    %c0_1 = arith.constant 0 : index
    %c0_2 = arith.constant 0 : index
    %2 = vector.load %arg2[%c0_0, %c0_1, %c0_2] : memref<1x1x128xf32, #tpu.memory_space<vmem>>, vector<1x1x128xf32>
    %3 = vector.shape_cast %2 : vector<1x1x128xf32> to vector<1x128xf32>
    %c0_3 = arith.constant 0 : index
    %c0_4 = arith.constant 0 : index
    %c0_5 = arith.constant 0 : index
    %4 = vector.load %arg4[%c0_3, %c0_4, %c0_5] : memref<7x1x128xf32, #tpu.memory_space<vmem>>, vector<1x1x128xf32>
    %5 = vector.shape_cast %4 : vector<1x1x128xf32> to vector<1x128xf32>
    %c1 = arith.constant 1 : index
    %c0_6 = arith.constant 0 : index
    %c0_7 = arith.constant 0 : index
    %6 = vector.load %arg4[%c1, %c0_6, %c0_7] : memref<7x1x128xf32, #tpu.memory_space<vmem>>, vector<1x1x128xf32>
    %7 = vector.shape_cast %6 : vector<1x1x128xf32> to vector<1x128xf32>
    %8 = arith.maximumf %5, %7 : vector<1x128xf32>
    %c2 = arith.constant 2 : index
    %c0_8 = arith.constant 0 : index
    %c0_9 = arith.constant 0 : index
    %9 = vector.load %arg4[%c2, %c0_8, %c0_9] : memref<7x1x128xf32, #tpu.memory_space<vmem>>, vector<1x1x128xf32>
    %10 = vector.shape_cast %9 : vector<1x1x128xf32> to vector<1x128xf32>
    %11 = arith.maximumf %8, %10 : vector<1x128xf32>
    %c3 = arith.constant 3 : index
    %c0_10 = arith.constant 0 : index
    %c0_11 = arith.constant 0 : index
    %12 = vector.load %arg4[%c3, %c0_10, %c0_11] : memref<7x1x128xf32, #tpu.memory_space<vmem>>, vector<1x1x128xf32>
    %13 = vector.shape_cast %12 : vector<1x1x128xf32> to vector<1x128xf32>
    %14 = arith.maximumf %11, %13 : vector<1x128xf32>
    %c4 = arith.constant 4 : index
    %c0_12 = arith.constant 0 : index
    %c0_13 = arith.constant 0 : index
    %15 = vector.load %arg4[%c4, %c0_12, %c0_13] : memref<7x1x128xf32, #tpu.memory_space<vmem>>, vector<1x1x128xf32>
    %16 = vector.shape_cast %15 : vector<1x1x128xf32> to vector<1x128xf32>
    %17 = arith.maximumf %14, %16 : vector<1x128xf32>
    %c5 = arith.constant 5 : index
    %c0_14 = arith.constant 0 : index
    %c0_15 = arith.constant 0 : index
    %18 = vector.load %arg4[%c5, %c0_14, %c0_15] : memref<7x1x128xf32, #tpu.memory_space<vmem>>, vector<1x1x128xf32>
    %19 = vector.shape_cast %18 : vector<1x1x128xf32> to vector<1x128xf32>
    %20 = arith.maximumf %17, %19 : vector<1x128xf32>
    %c6 = arith.constant 6 : index
    %c0_16 = arith.constant 0 : index
    %c0_17 = arith.constant 0 : index
    %21 = vector.load %arg4[%c6, %c0_16, %c0_17] : memref<7x1x128xf32, #tpu.memory_space<vmem>>, vector<1x1x128xf32>
    %22 = vector.shape_cast %21 : vector<1x1x128xf32> to vector<1x128xf32>
    %23 = arith.maximumf %20, %22 : vector<1x128xf32>
    %24 = arith.extui %1 : i1 to i32
    %c0_i32_18 = arith.constant 0 : i32
    %25 = arith.cmpi ne, %24, %c0_i32_18 : i32
    scf.if %25 {
      %c3_20 = arith.constant 3 : index
      %c0_21 = arith.constant 0 : index
      %c0_22 = arith.constant 0 : index
      %29 = vector.load %arg4[%c3_20, %c0_21, %c0_22] : memref<7x1x128xf32, #tpu.memory_space<vmem>>, vector<1x1x128xf32>
      %30 = vector.shape_cast %29 : vector<1x1x128xf32> to vector<1x128xf32>
      %31 = arith.subf %30, %23 : vector<1x128xf32>
      %32 = math.exp %31 : vector<1x128xf32>
      %cst = arith.constant 5.000000e-01 : f32
      %33 = vector.broadcast %cst : f32 to vector<1x128xf32>
      %34 = arith.mulf %33, %3 : vector<1x128xf32>
      %35 = arith.mulf %32, %34 : vector<1x128xf32>
      %c0_23 = arith.constant 0 : index
      %c0_24 = arith.constant 0 : index
      %c0_25 = arith.constant 0 : index
      %36 = vector.load %arg3[%c0_23, %c0_24, %c0_25] : memref<3x1x128xf32, #tpu.memory_space<vmem>>, vector<1x1x128xf32>
      %37 = vector.shape_cast %36 : vector<1x1x128xf32> to vector<1x128xf32>
      %cst_26 = arith.constant 0.899999976 : f32
      %38 = vector.broadcast %cst_26 : f32 to vector<1x128xf32>
      %39 = arith.mulf %38, %37 : vector<1x128xf32>
      %cst_27 = arith.constant 1.000000e-01 : f32
      %40 = vector.broadcast %cst_27 : f32 to vector<1x128xf32>
      %41 = arith.mulf %40, %3 : vector<1x128xf32>
      %42 = arith.addf %39, %41 : vector<1x128xf32>
      %c0_28 = arith.constant 0 : index
      %c0_29 = arith.constant 0 : index
      %c0_30 = arith.constant 0 : index
      %43 = vector.load %arg6[%c0_28, %c0_29, %c0_30] : memref<3x1x128xf32, #tpu.memory_space<vmem>>, vector<1x1x128xf32>
      %44 = vector.shape_cast %43 : vector<1x1x128xf32> to vector<1x128xf32>
      %45 = vector.shape_cast %42 : vector<1x128xf32> to vector<1x1x128xf32>
      tpu.vector_store %arg6[%c0_28, %c0_29, %c0_30], %45 {strides = array<i32>} : memref<3x1x128xf32, #tpu.memory_space<vmem>>, vector<1x1x128xf32>,
      %c4_31 = arith.constant 4 : index
      %c0_32 = arith.constant 0 : index
      %c0_33 = arith.constant 0 : index
      %46 = vector.load %arg4[%c4_31, %c0_32, %c0_33] : memref<7x1x128xf32, #tpu.memory_space<vmem>>, vector<1x1x128xf32>
      %47 = vector.shape_cast %46 : vector<1x1x128xf32> to vector<1x128xf32>
      %48 = arith.subf %47, %23 : vector<1x128xf32>
      %49 = math.exp %48 : vector<1x128xf32>
      %c2_34 = arith.constant 2 : index
      %c0_35 = arith.constant 0 : index
      %c0_36 = arith.constant 0 : index
      %50 = vector.load %arg4[%c2_34, %c0_35, %c0_36] : memref<7x1x128xf32, #tpu.memory_space<vmem>>, vector<1x1x128xf32>
      %51 = vector.shape_cast %50 : vector<1x1x128xf32> to vector<1x128xf32>
      %52 = arith.subf %51, %23 : vector<1x128xf32>
      %53 = math.exp %52 : vector<1x128xf32>
      %54 = arith.addf %32, %49 : vector<1x128xf32>
      %55 = arith.addf %54, %53 : vector<1x128xf32>
      %56 = arith.mulf %49, %42 : vector<1x128xf32>
      %57 = arith.addf %35, %56 : vector<1x128xf32>
      %58 = arith.subf %3, %42 : vector<1x128xf32>
      %59 = arith.mulf %53, %58 : vector<1x128xf32>
      %60 = arith.addf %57, %59 : vector<1x128xf32>
      %c1_37 = arith.constant 1 : index
      %c0_38 = arith.constant 0 : index
      %c0_39 = arith.constant 0 : index
      %61 = vector.load %arg3[%c1_37, %c0_38, %c0_39] : memref<3x1x128xf32, #tpu.memory_space<vmem>>, vector<1x1x128xf32>
      %62 = vector.shape_cast %61 : vector<1x1x128xf32> to vector<1x128xf32>
      %cst_40 = arith.constant 0.699999988 : f32
      %63 = vector.broadcast %cst_40 : f32 to vector<1x128xf32>
      %64 = arith.mulf %63, %62 : vector<1x128xf32>
      %cst_41 = arith.constant 3.000000e-01 : f32
      %65 = vector.broadcast %cst_41 : f32 to vector<1x128xf32>
      %66 = arith.mulf %65, %3 : vector<1x128xf32>
      %67 = arith.addf %64, %66 : vector<1x128xf32>
      %c1_42 = arith.constant 1 : index
      %c0_43 = arith.constant 0 : index
      %c0_44 = arith.constant 0 : index
      %68 = vector.load %arg6[%c1_42, %c0_43, %c0_44] : memref<3x1x128xf32, #tpu.memory_space<vmem>>, vector<1x1x128xf32>
      %69 = vector.shape_cast %68 : vector<1x1x128xf32> to vector<1x128xf32>
      %70 = vector.shape_cast %67 : vector<1x128xf32> to vector<1x1x128xf32>
      tpu.vector_store %arg6[%c1_42, %c0_43, %c0_44], %70 {strides = array<i32>} : memref<3x1x128xf32, #tpu.memory_space<vmem>>, vector<1x1x128xf32>,
      %c5_45 = arith.constant 5 : index
      %c0_46 = arith.constant 0 : index
      %c0_47 = arith.constant 0 : index
      %71 = vector.load %arg4[%c5_45, %c0_46, %c0_47] : memref<7x1x128xf32, #tpu.memory_space<vmem>>, vector<1x1x128xf32>
      %72 = vector.shape_cast %71 : vector<1x1x128xf32> to vector<1x128xf32>
      %73 = arith.subf %72, %23 : vector<1x128xf32>
      %74 = math.exp %73 : vector<1x128xf32>
      %c1_48 = arith.constant 1 : index
      %c0_49 = arith.constant 0 : index
      %c0_50 = arith.constant 0 : index
      %75 = vector.load %arg4[%c1_48, %c0_49, %c0_50] : memref<7x1x128xf32, #tpu.memory_space<vmem>>, vector<1x1x128xf32>
      %76 = vector.shape_cast %75 : vector<1x1x128xf32> to vector<1x128xf32>
      %77 = arith.subf %76, %23 : vector<1x128xf32>
      %78 = math.exp %77 : vector<1x128xf32>
      %79 = arith.addf %55, %74 : vector<1x128xf32>
      %80 = arith.addf %79, %78 : vector<1x128xf32>
      %81 = arith.mulf %74, %67 : vector<1x128xf32>
      %82 = arith.addf %60, %81 : vector<1x128xf32>
      %83 = arith.subf %3, %67 : vector<1x128xf32>
      %84 = arith.mulf %78, %83 : vector<1x128xf32>
      %85 = arith.addf %82, %84 : vector<1x128xf32>
      %c2_51 = arith.constant 2 : index
      %c0_52 = arith.constant 0 : index
      %c0_53 = arith.constant 0 : index
      %86 = vector.load %arg3[%c2_51, %c0_52, %c0_53] : memref<3x1x128xf32, #tpu.memory_space<vmem>>, vector<1x1x128xf32>
      %87 = vector.shape_cast %86 : vector<1x1x128xf32> to vector<1x128xf32>
      %cst_54 = arith.constant 5.000000e-01 : f32
      %88 = vector.broadcast %cst_54 : f32 to vector<1x128xf32>
      %89 = arith.mulf %88, %87 : vector<1x128xf32>
      %cst_55 = arith.constant 5.000000e-01 : f32
      %90 = vector.broadcast %cst_55 : f32 to vector<1x128xf32>
      %91 = arith.mulf %90, %3 : vector<1x128xf32>
      %92 = arith.addf %89, %91 : vector<1x128xf32>
      %c2_56 = arith.constant 2 : index
      %c0_57 = arith.constant 0 : index
      %c0_58 = arith.constant 0 : index
      %93 = vector.load %arg6[%c2_56, %c0_57, %c0_58] : memref<3x1x128xf32, #tpu.memory_space<vmem>>, vector<1x1x128xf32>
      %94 = vector.shape_cast %93 : vector<1x1x128xf32> to vector<1x128xf32>
      %95 = vector.shape_cast %92 : vector<1x128xf32> to vector<1x1x128xf32>
      tpu.vector_store %arg6[%c2_56, %c0_57, %c0_58], %95 {strides = array<i32>} : memref<3x1x128xf32, #tpu.memory_space<vmem>>, vector<1x1x128xf32>,
      %c6_59 = arith.constant 6 : index
      %c0_60 = arith.constant 0 : index
      %c0_61 = arith.constant 0 : index
      %96 = vector.load %arg4[%c6_59, %c0_60, %c0_61] : memref<7x1x128xf32, #tpu.memory_space<vmem>>, vector<1x1x128xf32>
      %97 = vector.shape_cast %96 : vector<1x1x128xf32> to vector<1x128xf32>
      %98 = arith.subf %97, %23 : vector<1x128xf32>
      %99 = math.exp %98 : vector<1x128xf32>
      %c0_62 = arith.constant 0 : index
      %c0_63 = arith.constant 0 : index
      %c0_64 = arith.constant 0 : index
      %100 = vector.load %arg4[%c0_62, %c0_63, %c0_64] : memref<7x1x128xf32, #tpu.memory_space<vmem>>, vector<1x1x128xf32>
      %101 = vector.shape_cast %100 : vector<1x1x128xf32> to vector<1x128xf32>
      %102 = arith.subf %101, %23 : vector<1x128xf32>
      %103 = math.exp %102 : vector<1x128xf32>
      %104 = arith.addf %80, %99 : vector<1x128xf32>
      %105 = arith.addf %104, %103 : vector<1x128xf32>
      %106 = arith.mulf %99, %92 : vector<1x128xf32>
      %107 = arith.addf %85, %106 : vector<1x128xf32>
      %108 = arith.subf %3, %92 : vector<1x128xf32>
      %109 = arith.mulf %103, %108 : vector<1x128xf32>
      %110 = arith.addf %107, %109 : vector<1x128xf32>
      %cst_65 = arith.constant 2.000000e+00 : f32
      %111 = vector.broadcast %cst_65 : f32 to vector<1x128xf32>
      %112 = arith.mulf %111, %110 : vector<1x128xf32>
      %113 = arith.divf %112, %105 : vector<1x128xf32>
      %c0_66 = arith.constant 0 : index
      %c0_67 = arith.constant 0 : index
      %c0_68 = arith.constant 0 : index
      %114 = vector.load %arg5[%c0_66, %c0_67, %c0_68] : memref<1x1x128xf32, #tpu.memory_space<vmem>>, vector<1x1x128xf32>
      %115 = vector.shape_cast %114 : vector<1x1x128xf32> to vector<1x128xf32>
      %116 = vector.shape_cast %113 : vector<1x128xf32> to vector<1x1x128xf32>
      tpu.vector_store %arg5[%c0_66, %c0_67, %c0_68], %116 {strides = array<i32>} : memref<1x1x128xf32, #tpu.memory_space<vmem>>, vector<1x1x128xf32>,
    } else {
    }
    %true = arith.constant true
    %26 = arith.xori %1, %true : i1
    %27 = arith.extui %26 : i1 to i32
    %c0_i32_19 = arith.constant 0 : i32
    %28 = arith.cmpi ne, %27, %c0_i32_19 : i32
    scf.if %28 {
      %c3_20 = arith.constant 3 : index
      %c0_21 = arith.constant 0 : index
      %c0_22 = arith.constant 0 : index
      %29 = vector.load %arg4[%c3_20, %c0_21, %c0_22] : memref<7x1x128xf32, #tpu.memory_space<vmem>>, vector<1x1x128xf32>
      %30 = vector.shape_cast %29 : vector<1x1x128xf32> to vector<1x128xf32>
      %31 = arith.subf %30, %23 : vector<1x128xf32>
      %32 = math.exp %31 : vector<1x128xf32>
      %c4_23 = arith.constant 4 : index
      %c0_24 = arith.constant 0 : index
      %c0_25 = arith.constant 0 : index
      %33 = vector.load %arg4[%c4_23, %c0_24, %c0_25] : memref<7x1x128xf32, #tpu.memory_space<vmem>>, vector<1x1x128xf32>
      %34 = vector.shape_cast %33 : vector<1x1x128xf32> to vector<1x128xf32>
      %35 = arith.subf %34, %23 : vector<1x128xf32>
      %36 = math.exp %35 : vector<1x128xf32>
      %37 = arith.addf %32, %36 : vector<1x128xf32>
      %c5_26 = arith.constant 5 : index
      %c0_27 = arith.constant 0 : index
      %c0_28 = arith.constant 0 : index
      %38 = vector.load %arg4[%c5_26, %c0_27, %c0_28] : memref<7x1x128xf32, #tpu.memory_space<vmem>>, vector<1x1x128xf32>
      %39 = vector.shape_cast %38 : vector<1x1x128xf32> to vector<1x128xf32>
      %40 = arith.subf %39, %23 : vector<1x128xf32>
      %41 = math.exp %40 : vector<1x128xf32>
      %42 = arith.addf %37, %41 : vector<1x128xf32>
      %c6_29 = arith.constant 6 : index
      %c0_30 = arith.constant 0 : index
      %c0_31 = arith.constant 0 : index
      %43 = vector.load %arg4[%c6_29, %c0_30, %c0_31] : memref<7x1x128xf32, #tpu.memory_space<vmem>>, vector<1x1x128xf32>
      %44 = vector.shape_cast %43 : vector<1x1x128xf32> to vector<1x128xf32>
      %45 = arith.subf %44, %23 : vector<1x128xf32>
      %46 = math.exp %45 : vector<1x128xf32>
      %47 = arith.addf %42, %46 : vector<1x128xf32>
      %c0_32 = arith.constant 0 : index
      %c0_33 = arith.constant 0 : index
      %c0_34 = arith.constant 0 : index
      %48 = vector.load %arg4[%c0_32, %c0_33, %c0_34] : memref<7x1x128xf32, #tpu.memory_space<vmem>>, vector<1x1x128xf32>
      %49 = vector.shape_cast %48 : vector<1x1x128xf32> to vector<1x128xf32>
      %50 = arith.subf %49, %23 : vector<1x128xf32>
      %51 = math.exp %50 : vector<1x128xf32>
      %c1_35 = arith.constant 1 : index
      %c0_36 = arith.constant 0 : index
      %c0_37 = arith.constant 0 : index
      %52 = vector.load %arg4[%c1_35, %c0_36, %c0_37] : memref<7x1x128xf32, #tpu.memory_space<vmem>>, vector<1x1x128xf32>
      %53 = vector.shape_cast %52 : vector<1x1x128xf32> to vector<1x128xf32>
      %54 = arith.subf %53, %23 : vector<1x128xf32>
      %55 = math.exp %54 : vector<1x128xf32>
      %56 = arith.addf %51, %55 : vector<1x128xf32>
      %c2_38 = arith.constant 2 : index
      %c0_39 = arith.constant 0 : index
      %c0_40 = arith.constant 0 : index
      %57 = vector.load %arg4[%c2_38, %c0_39, %c0_40] : memref<7x1x128xf32, #tpu.memory_space<vmem>>, vector<1x1x128xf32>
      %58 = vector.shape_cast %57 : vector<1x1x128xf32> to vector<1x128xf32>
      %59 = arith.subf %58, %23 : vector<1x128xf32>
      %60 = math.exp %59 : vector<1x128xf32>
      %61 = arith.addf %56, %60 : vector<1x128xf32>
      %c0_41 = arith.constant 0 : index
      %c0_42 = arith.constant 0 : index
      %c0_43 = arith.constant 0 : index
      %62 = vector.load %arg6[%c0_41, %c0_42, %c0_43] : memref<3x1x128xf32, #tpu.memory_space<vmem>>, vector<1x1x128xf32>
      %63 = vector.shape_cast %62 : vector<1x1x128xf32> to vector<1x128xf32>
      %64 = vector.shape_cast %3 : vector<1x128xf32> to vector<1x1x128xf32>
      tpu.vector_store %arg6[%c0_41, %c0_42, %c0_43], %64 {strides = array<i32>} : memref<3x1x128xf32, #tpu.memory_space<vmem>>, vector<1x1x128xf32>,
      %c1_44 = arith.constant 1 : index
      %c0_45 = arith.constant 0 : index
      %c0_46 = arith.constant 0 : index
      %65 = vector.load %arg6[%c1_44, %c0_45, %c0_46] : memref<3x1x128xf32, #tpu.memory_space<vmem>>, vector<1x1x128xf32>
      %66 = vector.shape_cast %65 : vector<1x1x128xf32> to vector<1x128xf32>
      %67 = vector.shape_cast %3 : vector<1x128xf32> to vector<1x1x128xf32>
      tpu.vector_store %arg6[%c1_44, %c0_45, %c0_46], %67 {strides = array<i32>} : memref<3x1x128xf32, #tpu.memory_space<vmem>>, vector<1x1x128xf32>,
      %c2_47 = arith.constant 2 : index
      %c0_48 = arith.constant 0 : index
      %c0_49 = arith.constant 0 : index
      %68 = vector.load %arg6[%c2_47, %c0_48, %c0_49] : memref<3x1x128xf32, #tpu.memory_space<vmem>>, vector<1x1x128xf32>
      %69 = vector.shape_cast %68 : vector<1x1x128xf32> to vector<1x128xf32>
      %70 = vector.shape_cast %3 : vector<1x128xf32> to vector<1x1x128xf32>
      tpu.vector_store %arg6[%c2_47, %c0_48, %c0_49], %70 {strides = array<i32>} : memref<3x1x128xf32, #tpu.memory_space<vmem>>, vector<1x1x128xf32>,
      %cst = arith.constant 2.000000e+00 : f32
      %71 = vector.broadcast %cst : f32 to vector<1x128xf32>
      %72 = arith.mulf %71, %47 : vector<1x128xf32>
      %73 = arith.mulf %72, %3 : vector<1x128xf32>
      %74 = arith.addf %47, %61 : vector<1x128xf32>
      %75 = arith.divf %73, %74 : vector<1x128xf32>
      %c0_50 = arith.constant 0 : index
      %c0_51 = arith.constant 0 : index
      %c0_52 = arith.constant 0 : index
      %76 = vector.load %arg5[%c0_50, %c0_51, %c0_52] : memref<1x1x128xf32, #tpu.memory_space<vmem>>, vector<1x1x128xf32>
      %77 = vector.shape_cast %76 : vector<1x1x128xf32> to vector<1x128xf32>
      %78 = vector.shape_cast %75 : vector<1x128xf32> to vector<1x1x128xf32>
      tpu.vector_store %arg5[%c0_50, %c0_51, %c0_52], %78 {strides = array<i32>} : memref<1x1x128xf32, #tpu.memory_space<vmem>>, vector<1x1x128xf32>,
    } else {
    }
    return
  }
  func.func @transform_0(%arg0: i32, %arg1: memref<1xi32, #tpu.memory_space<smem>>) -> (i32, i32, i32) {
    %c0_i32 = arith.constant 0 : i32
    %c0_i32_0 = arith.constant 0 : i32
    %c0_i32_1 = arith.constant 0 : i32
    return %c0_i32, %arg0, %c0_i32_0 : i32, i32, i32
  }
  func.func @transform_1(%arg0: i32, %arg1: memref<1xi32, #tpu.memory_space<smem>>) -> (i32, i32, i32) {
    %c0_i32 = arith.constant 0 : i32
    %c0_i32_0 = arith.constant 0 : i32
    %c0_i32_1 = arith.constant 0 : i32
    return %c0_i32, %arg0, %c0_i32_0 : i32, i32, i32
  }
  func.func @transform_2(%arg0: i32, %arg1: memref<1xi32, #tpu.memory_space<smem>>) -> (i32, i32, i32) {
    %c0_i32 = arith.constant 0 : i32
    %c0_i32_0 = arith.constant 0 : i32
    %c0_i32_1 = arith.constant 0 : i32
    return %c0_i32, %arg0, %c0_i32_0 : i32, i32, i32
  }
  func.func @transform_3(%arg0: i32, %arg1: memref<1xi32, #tpu.memory_space<smem>>) -> (i32, i32, i32) {
    %c0_i32 = arith.constant 0 : i32
    %c0_i32_0 = arith.constant 0 : i32
    %c0_i32_1 = arith.constant 0 : i32
    return %c0_i32, %arg0, %c0_i32_0 : i32, i32, i32
  }
  func.func @transform_4(%arg0: i32, %arg1: memref<1xi32, #tpu.memory_space<smem>>) -> (i32, i32, i32) {
    %c0_i32 = arith.constant 0 : i32
    %c0_i32_0 = arith.constant 0 : i32
    %c0_i32_1 = arith.constant 0 : i32
    return %c0_i32, %arg0, %c0_i32_0 : i32, i32, i32
  }
}

</mosaic_0001>

<llo_original>
// kernel: momentum_forward.1
$region0: #{momentum_forward.1}
  #allocation0 [shape = 'u32[]', space=smem, size = 0x4, offset = 0x4, fixed_abs, tag = 'smem constant byte address 0x4 - core index']
  #allocation1 [shape = 'u32[144,128]{1,0:T(1,128)}', space=vmem, size = 0x12000, scoped, tag = 'internal scratch']
  #allocation2 [shape = 's32[1]{0}', space=sflag, size = 0x4, scoped, tag = 'scoped memory for momentum_forward.1']
  #allocation3 [shape = 's32[1]{0:T(128)S(6)}', space=smem, size = 0x200, scoped, tag = 'prefetched SMEM operand 0']
  %s0 = inlined_call_operand.<no memory space> [shape: s32[1], index: 0, kind: input, shape index: {}]
  %s1 = inlined_call_operand.vmem [shape: f32[1,1,128], index: 1, kind: input, shape index: {}]
  %s2 = inlined_call_operand.vmem [shape: f32[3,1,128], index: 2, kind: input, shape index: {}]
  %s3 = inlined_call_operand.vmem [shape: f32[7,1,128], index: 3, kind: input, shape index: {}]
  %s4 = inlined_call_operand.vmem [shape: f32[1,1,128], index: 4, kind: output, shape index: {0}]
  %s5 = inlined_call_operand.vmem [shape: f32[3,1,128], index: 5, kind: output, shape index: {1}]
  %6 = xla_tuple %s4, %s5
  %s7 = sld [smem:[#allocation0]]
  $region38: #{momentum_forward.1} parent=0
    _
  %s9 = ssub.s32 1, %s7
  %s10 = scalar_select 0, %s9, %s7
  %11 = sst [smem:[#allocation3]] %s0
  // Predicated region
  $region2: #{momentum_forward.1} parent=0 // pred_check
    _
  $region3: #{momentum_forward.1} parent=0 // pred_check_branch
    %13 = sbr.rel (0) target = $region5
  $region4: #{momentum_forward.1} parent=0 // pred_region
    _
  $region5: #{momentum_forward.1} parent=0 // pred_fallthru
    _
  // Predicated region
  $region6: #{momentum_forward.1} parent=0 // pred_check
    _
  $region7: #{momentum_forward.1} parent=0 // pred_check_branch
    %15 = sbr.rel (0) target = $region9
  $region8: #{momentum_forward.1} parent=0 // pred_region
    _
  $region9: #{momentum_forward.1} parent=0 // pred_fallthru
    _
  // Predicated region
  $region10: #{momentum_forward.1} parent=0 // pred_check
    _
  $region11: #{momentum_forward.1} parent=0 // pred_check_branch
    %17 = sbr.rel (0) target = $region13
  $region12: #{momentum_forward.1} parent=0 // pred_region
    _
  $region13: #{momentum_forward.1} parent=0 // pred_fallthru
    _
  %s18 = sld [smem:[#allocation3]]
  %p19 = scmp.ne.s32.totalorder %s18, 0
  %v20 = vld [vmem:[%s1] sm:$0x1]
  %v21 = vld [vmem:[%s3] sm:$0x1]
  %s22 = scalar_lea.vmem %s3, 1
  %v23 = vld [vmem:[%s22] sm:$0x1]
  %v24 = vmax.f32 %v21, %v23
  %s25 = scalar_lea.vmem %s3, 2
  %v26 = vld [vmem:[%s25] sm:$0x1]
  %v27 = vmax.f32 %v24, %v26
  %s28 = scalar_lea.vmem %s3, 3
  %v29 = vld [vmem:[%s28] sm:$0x1]
  %v30 = vmax.f32 %v27, %v29
  %s31 = scalar_lea.vmem %s3, 4
  %v32 = vld [vmem:[%s31] sm:$0x1]
  %v33 = vmax.f32 %v30, %v32
  %s34 = scalar_lea.vmem %s3, 5
  %v35 = vld [vmem:[%s34] sm:$0x1]
  %v36 = vmax.f32 %v33, %v35
  %s37 = scalar_lea.vmem %s3, 6
  %v38 = vld [vmem:[%s37] sm:$0x1]
  %v39 = vmax.f32 %v36, %v38
  // Predicated region
  $region14: #{momentum_forward.1} parent=0 // pred_check
    %p40 = pneg %p19
  $region15: #{momentum_forward.1} parent=0 // pred_check_branch
    %42 = sbr.rel (%p40) target = $region17
  $region16: #{momentum_forward.1} parent=0 // pred_region
    %v43 = vld [vmem:[%s28] sm:$0x1]
    %v44 = vsub.f32 %v43, %v39
    %v45 = vmul.f32 %v44, 1.442695
    %v46 = vpow.pop %v45
    %v47 = vmul.f32 %v20, 0.5
    %v48 = vmul.f32 %v46, %v47
    %v49 = vld [vmem:[%s2] sm:$0x1]
    %v50 = vmul.f32 %v49, 0.9
    %v51 = vmul.f32 %v20, 0.1
    %v52 = vadd.f32 %v50, %v51
    %53 = vst [vmem:[%s5] sm:$0x1] %v52
    %v54 = vld [vmem:[%s31] sm:$0x1]
    %v55 = vsub.f32 %v54, %v39
    %v56 = vmul.f32 %v55, 1.442695
    %v57 = vpow.pop %v56
    %v58 = vld [vmem:[%s25] sm:$0x1]
    %v59 = vsub.f32 %v58, %v39
    %v60 = vmul.f32 %v59, 1.442695
    %v61 = vpow.pop %v60
    %v62 = vadd.f32 %v46, %v57
    %v63 = vadd.f32 %v62, %v61
    %v64 = vmul.f32 %v57, %v52
    %v65 = vadd.f32 %v48, %v64
    %v66 = vsub.f32 %v20, %v52
    %v67 = vmul.f32 %v61, %v66
    %v68 = vadd.f32 %v65, %v67
    %s69 = scalar_lea.vmem %s2, 1
    %v70 = vld [vmem:[%s69] sm:$0x1]
    %v71 = vmul.f32 %v70, 0.7
    %v72 = vmul.f32 %v20, 0.3
    %v73 = vadd.f32 %v71, %v72
    %s74 = scalar_lea.vmem %s5, 1
    %75 = vst [vmem:[%s74] sm:$0x1] %v73
    %v76 = vld [vmem:[%s34] sm:$0x1]
    %v77 = vsub.f32 %v76, %v39
    %v78 = vmul.f32 %v77, 1.442695
    %v79 = vpow.pop %v78
    %v80 = vld [vmem:[%s22] sm:$0x1]
    %v81 = vsub.f32 %v80, %v39
    %v82 = vmul.f32 %v81, 1.442695
    %v83 = vpow.pop %v82
    %v84 = vadd.f32 %v63, %v79
    %v85 = vadd.f32 %v84, %v83
    %v86 = vmul.f32 %v79, %v73
    %v87 = vadd.f32 %v68, %v86
    %v88 = vsub.f32 %v20, %v73
    %v89 = vmul.f32 %v83, %v88
    %v90 = vadd.f32 %v87, %v89
    %s91 = scalar_lea.vmem %s2, 2
    %v92 = vld [vmem:[%s91] sm:$0x1]
    %v93 = vmul.f32 %v92, 0.5
    %v94 = vadd.f32 %v93, %v47
    %s95 = scalar_lea.vmem %s5, 2
    %96 = vst [vmem:[%s95] sm:$0x1] %v94
    %v97 = vld [vmem:[%s37] sm:$0x1]
    %v98 = vsub.f32 %v97, %v39
    %v99 = vmul.f32 %v98, 1.442695
    %v100 = vpow.pop %v99
    %v101 = vld [vmem:[%s3] sm:$0x1]
    %v102 = vsub.f32 %v101, %v39
    %v103 = vmul.f32 %v102, 1.442695
    %v104 = vpow.pop %v103
    %v105 = vadd.f32 %v85, %v100
    %v106 = vadd.f32 %v105, %v104
    %v107 = vmul.f32 %v100, %v94
    %v108 = vadd.f32 %v90, %v107
    %v109 = vsub.f32 %v20, %v94
    %v110 = vmul.f32 %v104, %v109
    %v111 = vadd.f32 %v108, %v110
    %v112 = vmul.f32 %v111, 2.0
    %v113 = vrcp.pop %v106
    %v114 = vmul.f32 %v112, %v113
    %115 = vst [vmem:[%s4] sm:$0x1] %v114
  $region17: #{momentum_forward.1} parent=0 // pred_fallthru
    _
  %p116 = scmp.eq.s32.totalorder %s18, 0
  // Predicated region
  $region18: #{momentum_forward.1} parent=0 // pred_check
    %p117 = pneg %p116
  $region19: #{momentum_forward.1} parent=0 // pred_check_branch
    %119 = sbr.rel (%p117) target = $region21
  $region20: #{momentum_forward.1} parent=0 // pred_region
    %v120 = vld [vmem:[%s28] sm:$0x1]
    %v121 = vsub.f32 %v120, %v39
    %v122 = vmul.f32 %v121, 1.442695
    %v123 = vpow.pop %v122
    %v124 = vld [vmem:[%s31] sm:$0x1]
    %v125 = vsub.f32 %v124, %v39
    %v126 = vmul.f32 %v125, 1.442695
    %v127 = vpow.pop %v126
    %v128 = vadd.f32 %v123, %v127
    %v129 = vld [vmem:[%s34] sm:$0x1]
    %v130 = vsub.f32 %v129, %v39
    %v131 = vmul.f32 %v130, 1.442695
    %v132 = vpow.pop %v131
    %v133 = vadd.f32 %v128, %v132
    %v134 = vld [vmem:[%s37] sm:$0x1]
    %v135 = vsub.f32 %v134, %v39
    %v136 = vmul.f32 %v135, 1.442695
    %v137 = vpow.pop %v136
    %v138 = vadd.f32 %v133, %v137
    %v139 = vld [vmem:[%s3] sm:$0x1]
    %v140 = vsub.f32 %v139, %v39
    %v141 = vmul.f32 %v140, 1.442695
    %v142 = vpow.pop %v141
    %v143 = vld [vmem:[%s22] sm:$0x1]
    %v144 = vsub.f32 %v143, %v39
    %v145 = vmul.f32 %v144, 1.442695
    %v146 = vpow.pop %v145
    %v147 = vadd.f32 %v142, %v146
    %v148 = vld [vmem:[%s25] sm:$0x1]
    %v149 = vsub.f32 %v148, %v39
    %v150 = vmul.f32 %v149, 1.442695
    %v151 = vpow.pop %v150
    %v152 = vadd.f32 %v147, %v151
    %153 = vst [vmem:[%s5] sm:$0x1] %v20
    %s154 = scalar_lea.vmem %s5, 1
    %155 = vst [vmem:[%s154] sm:$0x1] %v20
    %s156 = scalar_lea.vmem %s5, 2
    %157 = vst [vmem:[%s156] sm:$0x1] %v20
    %v158 = vmul.f32 %v138, 2.0
    %v159 = vmul.f32 %v158, %v20
    %v160 = vadd.f32 %v138, %v152
    %v161 = vrcp.pop %v160
    %v162 = vmul.f32 %v159, %v161
    %163 = vst [vmem:[%s4] sm:$0x1] %v162
  $region21: #{momentum_forward.1} parent=0 // pred_fallthru
    _
  // Predicated region
  $region22: #{momentum_forward.1} parent=0 // pred_check
    _
  $region23: #{momentum_forward.1} parent=0 // pred_check_branch
    %165 = sbr.rel (0) target = $region25
  $region24: #{momentum_forward.1} parent=0 // pred_region
    _
  $region25: #{momentum_forward.1} parent=0 // pred_fallthru
    _
  // Predicated region
  $region26: #{momentum_forward.1} parent=0 // pred_check
    _
  $region27: #{momentum_forward.1} parent=0 // pred_check_branch
    %167 = sbr.rel (0) target = $region29
  $region28: #{momentum_forward.1} parent=0 // pred_region
    _
  $region29: #{momentum_forward.1} parent=0 // pred_fallthru
    _
  // Predicated region
  $region30: #{momentum_forward.1} parent=0 // pred_check
    _
  $region31: #{momentum_forward.1} parent=0 // pred_check_branch
    %169 = sbr.rel (0) target = $region33
  $region32: #{momentum_forward.1} parent=0 // pred_region
    _
  $region33: #{momentum_forward.1} parent=0 // pred_fallthru
    _
  // Predicated region
  $region34: #{momentum_forward.1} parent=0 // pred_check
    _
  $region35: #{momentum_forward.1} parent=0 // pred_check_branch
    %171 = sbr.rel (0) target = $region37
  $region36: #{momentum_forward.1} parent=0 // pred_region
    _
  $region37: #{momentum_forward.1} parent=0 // pred_fallthru
    _

</llo_original>
